<compile_context>
chip_gen: v6e
topology: v6e:2x2x1
jax: 0.10.0
libtpu: 0.0.40
codegen_flags: <defaults>
</compile_context>

<pallas_src>
import jax
import jax.numpy as jnp
from jax import lax
from jax.experimental import pallas as pl
from jax.experimental.pallas import tpu as pltpu

_LANES = 128
_SUBLANES = 8
# ~4 MiB of combined (p + t) payload per grid step.
_TARGET_STEP_BYTES = 4 * 1024 * 1024
_VMEM_LIMIT_BYTES = 32 * 1024 * 1024


def _make_soft_dice_kernel(rows, tile_rows, inner_tiles, full_tiles,
                           needs_mask, fold):
    """Build the kernel closure over static tiling parameters.

    rows        : total number of valid 128-lane rows in the input slab
    tile_rows   : rows per grid block
    inner_tiles : number of inner ("arbitrary") grid steps per outer slot
    full_tiles  : number of tiles that are entirely inside `rows`
    needs_mask  : whether any grid tile extends past `rows` (partial/overhang)
    fold        : whether tile_rows % 8 == 0 (enables the (8,128) vreg fold)
    """

    def _accumulate(p, t, acc_pt_ref, acc_s_ref):
        pt = p * t
        s = p + t          # sum(p) + sum(t) fused into one accumulator
        if fold:
            # Fold along the sublane-tile axis down to a single (8,128) tile
            # before touching the accumulator (pure VPU adds, layout-preserving
            # reshape). Keeps accumulator load/store traffic at ~1 vreg/step.
            pt = pt.reshape(tile_rows // _SUBLANES, _SUBLANES, _LANES).sum(axis=0)
            s = s.reshape(tile_rows // _SUBLANES, _SUBLANES, _LANES).sum(axis=0)
        acc_pt_ref[...] += pt
        acc_s_ref[...] += s

    def kernel(p_ref, t_ref, o_ref, acc_pt_ref, acc_s_ref):
        i = pl.program_id(1)

        @pl.when(i == 0)
        def _():
            acc_pt_ref[...] = jnp.zeros_like(acc_pt_ref)
            acc_s_ref[...] = jnp.zeros_like(acc_s_ref)

        if needs_mask:
            tile_idx = pl.program_id(0) * inner_tiles + i
            is_boundary = tile_idx >= full_tiles

            # Fast path: fully in-bounds tiles skip the mask entirely.
            @pl.when(jnp.logical_not(is_boundary))
            def _():
                _accumulate(p_ref[...].astype(jnp.float32),
                            t_ref[...].astype(jnp.float32),
                            acc_pt_ref, acc_s_ref)

            # Slow path: partial boundary tile / fully-overhang tile. Mask is
            # applied before any arithmetic, so garbage in the out-of-bounds
            # portion of the (clamped) DMA cannot leak into the sums.
            @pl.when(is_boundary)
            def _():
                row_ids = tile_idx * tile_rows + lax.broadcasted_iota(
                    jnp.int32, (tile_rows, _LANES), 0)
                valid = row_ids < rows
                p = jnp.where(valid, p_ref[...].astype(jnp.float32), 0.0)
                t = jnp.where(valid, t_ref[...].astype(jnp.float32), 0.0)
                _accumulate(p, t, acc_pt_ref, acc_s_ref)
        else:
            _accumulate(p_ref[...].astype(jnp.float32),
                        t_ref[...].astype(jnp.float32),
                        acc_pt_ref, acc_s_ref)

        @pl.when(i == inner_tiles - 1)
        def _():
            # Tiny cross-lane reduce of the (8,128) partials + SMEM writeback
            # of this outer slot's [sum(p*t), sum(p)+sum(t)].
            o_ref[0, 0] = jnp.sum(acc_pt_ref[...])
            o_ref[0, 1] = jnp.sum(acc_s_ref[...])

    return kernel


def soft_dice_loss(logits, targets):
    """JAX wrapper reproducing SoftDiceLoss.forward(logits, targets).

    Returns a float32 scalar: 1 - (2*sum(p*t) + 1) / (sum(p) + sum(t) + 1).
    """
    assert logits.shape == targets.shape, "pred/target must have matching shapes"

    # Flatten (row-major, same ordering as torch.flatten on contiguous NCHW).
    p = jnp.reshape(logits, (-1,))
    t = jnp.reshape(targets, (-1,))
    n = p.shape[0]
    smooth = jnp.float32(1.0)

    rows = n // _LANES
    rem = n - rows * _LANES

    if rows == 0:
        # Degenerate tiny input: no kernel needed.
        m1 = p.astype(jnp.float32)
        m2 = t.astype(jnp.float32)
        intersection = jnp.sum(m1 * m2)
        total = jnp.sum(m1) + jnp.sum(m2)
    else:
        head = rows * _LANES
        # No jnp.pad of the full arrays: aligned case is a free reshape; the
        # ragged case streams the head and folds the <128-element tail below.
        if rem:
            p2 = p[:head].reshape(rows, _LANES)
            t2 = t[:head].reshape(rows, _LANES)
        else:
            p2 = p.reshape(rows, _LANES)
            t2 = t.reshape(rows, _LANES)

        # Byte-sized tile selection (dtype aware), rounded to a sublane multiple.
        bytes_per_row = _LANES * (p2.dtype.itemsize + t2.dtype.itemsize)
        tile_rows = max(_SUBLANES,
                        (_TARGET_STEP_BYTES // bytes_per_row) // _SUBLANES * _SUBLANES)
        if rows <= tile_rows:
            tile_rows = rows  # block == full array extent (always legal)

        num_tiles = pl.cdiv(rows, tile_rows)
        full_tiles = rows // tile_rows  # tiles entirely inside `rows`

        # Always split the outer axis when there is more than one tile; any
        # overhang grid point gets its block index clamped and is fully masked.
        outer = 2 if num_tiles >= 2 else 1
        inner_tiles = pl.cdiv(num_tiles, outer)
        needs_mask = (outer * inner_tiles) > full_tiles
        fold = (tile_rows % _SUBLANES) == 0
        acc_rows = _SUBLANES if fold else tile_rows
        max_block = num_tiles - 1

        kernel = _make_soft_dice_kernel(rows, tile_rows, inner_tiles,
                                        full_tiles, needs_mask, fold)

        def in_map(o, i, it=inner_tiles, mb=max_block):
            # Clamp so overhang grid points DMA a legal block (masked to zero
            # inside the kernel).
            return (jnp.minimum(o * it + i, mb), 0)

        cost = pl.CostEstimate(
            flops=int(3 * rows * _LANES),
            transcendentals=0,
            bytes_accessed=int(rows * bytes_per_row + outer * 2 * 4),
        )

        partials = pl.pallas_call(
            kernel,
            out_shape=jax.ShapeDtypeStruct((outer, 2), jnp.float32),
            grid_spec=pltpu.PrefetchScalarGridSpec(
                num_scalar_prefetch=0,
                grid=(outer, inner_tiles),
                in_specs=[
                    pl.BlockSpec((tile_rows, _LANES), in_map),
                    pl.BlockSpec((tile_rows, _LANES), in_map),
                ],
                out_specs=pl.BlockSpec((1, 2), lambda o, i: (o, 0),
                                       memory_space=pltpu.SMEM),
                scratch_shapes=[
                    pltpu.VMEM((acc_rows, _LANES), jnp.float32),  # sum(p*t)
                    pltpu.VMEM((acc_rows, _LANES), jnp.float32),  # sum(p+t)
                ],
            ),
            compiler_params=pltpu.CompilerParams(
                dimension_semantics=("parallel", "arbitrary"),
                vmem_limit_bytes=_VMEM_LIMIT_BYTES,
            ),
            cost_estimate=cost,
        )(p2, t2)

        intersection = jnp.sum(partials[:, 0])
        total = jnp.sum(partials[:, 1])

        if rem:
            # Tiny (<128-element) tail handled in the wrapper.
            tail_p = p[head:].astype(jnp.float32)
            tail_t = t[head:].astype(jnp.float32)
            intersection = intersection + jnp.sum(tail_p * tail_t)
            total = total + jnp.sum(tail_p) + jnp.sum(tail_t)

    dice = (2.0 * intersection + smooth) / (total + smooth)
    return (1.0 - dice).astype(jnp.float32)


def _reference_soft_dice_loss(logits, targets):
    smooth = 1.0
    m1 = jnp.reshape(logits, (-1,)).astype(jnp.float32)
    m2 = jnp.reshape(targets, (-1,)).astype(jnp.float32)
    inter = jnp.sum(m1 * m2)
    dice = (2.0 * inter + smooth) / (jnp.sum(m1) + jnp.sum(m2) + smooth)
    return 1.0 - dice


if __name__ == "__main__":
    key = jax.random.PRNGKey(0)

    # Primary small test: segmentation-style NCHW forward (aligned, single tile).
    k1, k2 = jax.random.split(key)
    x_shape = (2, 4, 16, 16)
    logits = jax.random.uniform(k1, x_shape, dtype=jnp.float32)           # "pred"
    targets = (jax.random.uniform(k2, x_shape) > 0.5).astype(jnp.float32)
    loss = soft_dice_loss(logits, targets)
    jax.block_until_ready(loss)
    ref = _reference_soft_dice_loss(logits, targets)
    assert jnp.allclose(loss, ref, rtol=1e-5, atol=1e-5), (loss, ref)

    # Ragged test: element count not a multiple of 128 (wrapper tail fold).
    k3, k4 = jax.random.split(k2)
    y_shape = (2, 3, 20, 20)
    logits2 = jax.random.uniform(k3, y_shape, dtype=jnp.float32)
    targets2 = (jax.random.uniform(k4, y_shape) > 0.5).astype(jnp.float32)
    loss2 = soft_dice_loss(logits2, targets2)
    jax.block_until_ready(loss2)
    ref2 = _reference_soft_dice_loss(logits2, targets2)
    assert jnp.allclose(loss2, ref2, rtol=1e-5, atol=1e-5), (loss2, ref2)

    # Multi-tile test: odd tile count -> outer split with clamped+masked
    # overhang block plus a partial boundary block (9216 rows, 4096-row tiles).
    k5, k6 = jax.random.split(k4)
    z_shape = (4, 4, 256, 288)
    logits3 = jax.random.uniform(k5, z_shape, dtype=jnp.float32)
    targets3 = (jax.random.uniform(k6, z_shape) > 0.5).astype(jnp.float32)
    loss3 = soft_dice_loss(logits3, targets3)
    jax.block_until_ready(loss3)
    ref3 = _reference_soft_dice_loss(logits3, targets3)
    assert jnp.allclose(loss3, ref3, rtol=1e-5, atol=1e-5), (loss3, ref3)

    # Narrow-dtype test: bf16 inputs, in-kernel cast, dtype-aware tile sizing.
    k7, k8 = jax.random.split(k6)
    w_shape = (2, 4, 64, 96)
    logits4 = jax.random.uniform(k7, w_shape, dtype=jnp.float32).astype(jnp.bfloat16)
    targets4 = (jax.random.uniform(k8, w_shape) > 0.5).astype(jnp.bfloat16)
    loss4 = soft_dice_loss(logits4, targets4)
    jax.block_until_ready(loss4)
    ref4 = _reference_soft_dice_loss(logits4, targets4)
    assert jnp.allclose(loss4, ref4, rtol=1e-5, atol=1e-5), (loss4, ref4)

    print("KERNEL_OK")
</pallas_src>

<mosaic_0001>
module attributes {stable_mosaic.version = 11 : i64} {
  func.func @kernel(%arg0: i32, %arg1: i32, %arg2: memref<16x128xf32, #tpu.memory_space<vmem>>, %arg3: memref<16x128xf32, #tpu.memory_space<vmem>>, %arg4: memref<1x2xf32, #tpu.memory_space<smem>>, %arg5: memref<8x128xf32, #tpu.memory_space<vmem>>, %arg6: memref<8x128xf32, #tpu.memory_space<vmem>>) attributes {dimension_semantics = [#tpu.dimension_semantics<parallel>, #tpu.dimension_semantics<arbitrary>], iteration_bounds = array<i64: 1, 1>, scalar_prefetch = 0 : i64, scratch_operands = 2 : i64, tpu.core_type = #tpu.core_type<tc>, window_params = [{transform_indices = @transform_0, window_bounds = array<i64: 16, 128>}, {transform_indices = @transform_1, window_bounds = array<i64: 16, 128>}, {transform_indices = @transform_2, window_bounds = array<i64: 1, 2>}]} {
    %c0_i32 = arith.constant 0 : i32
    %0 = arith.cmpi eq, %arg1, %c0_i32 : i32
    %1 = arith.extui %0 : i1 to i32
    %c0_i32_0 = arith.constant 0 : i32
    %2 = arith.cmpi ne, %1, %c0_i32_0 : i32
    scf.if %2 {
      %cst_15 = arith.constant 0.000000e+00 : f32
      %20 = vector.broadcast %cst_15 : f32 to vector<8x128xf32>
      %c0_16 = arith.constant 0 : index
      %c0_17 = arith.constant 0 : index
      %21 = vector.load %arg5[%c0_16, %c0_17] : memref<8x128xf32, #tpu.memory_space<vmem>>, vector<8x128xf32>
      tpu.vector_store %arg5[%c0_16, %c0_17], %20 {strides = array<i32>} : memref<8x128xf32, #tpu.memory_space<vmem>>, vector<8x128xf32>,
      %cst_18 = arith.constant 0.000000e+00 : f32
      %22 = vector.broadcast %cst_18 : f32 to vector<8x128xf32>
      %c0_19 = arith.constant 0 : index
      %c0_20 = arith.constant 0 : index
      %23 = vector.load %arg6[%c0_19, %c0_20] : memref<8x128xf32, #tpu.memory_space<vmem>>, vector<8x128xf32>
      tpu.vector_store %arg6[%c0_19, %c0_20], %22 {strides = array<i32>} : memref<8x128xf32, #tpu.memory_space<vmem>>, vector<8x128xf32>,
    } else {
    }
    %c0 = arith.constant 0 : index
    %c0_1 = arith.constant 0 : index
    %3 = vector.load %arg2[%c0, %c0_1] : memref<16x128xf32, #tpu.memory_space<vmem>>, vector<16x128xf32>
    %c0_2 = arith.constant 0 : index
    %c0_3 = arith.constant 0 : index
    %4 = vector.load %arg3[%c0_2, %c0_3] : memref<16x128xf32, #tpu.memory_space<vmem>>, vector<16x128xf32>
    %5 = arith.mulf %3, %4 : vector<16x128xf32>
    %6 = arith.addf %3, %4 : vector<16x128xf32>
    %7 = vector.shape_cast %5 : vector<16x128xf32> to vector<2x8x128xf32>
    %cst = arith.constant dense<0.000000e+00> : vector<8x128xf32>
    %8 = vector.multi_reduction <add>, %7, %cst [0] : vector<2x8x128xf32> to vector<8x128xf32>
    %9 = vector.shape_cast %6 : vector<16x128xf32> to vector<2x8x128xf32>
    %cst_4 = arith.constant dense<0.000000e+00> : vector<8x128xf32>
    %10 = vector.multi_reduction <add>, %9, %cst_4 [0] : vector<2x8x128xf32> to vector<8x128xf32>
    %c0_5 = arith.constant 0 : index
    %c0_6 = arith.constant 0 : index
    %11 = vector.load %arg5[%c0_5, %c0_6] : memref<8x128xf32, #tpu.memory_space<vmem>>, vector<8x128xf32>
    %12 = arith.addf %11, %8 : vector<8x128xf32>
    %c0_7 = arith.constant 0 : index
    %c0_8 = arith.constant 0 : index
    %13 = vector.load %arg5[%c0_7, %c0_8] : memref<8x128xf32, #tpu.memory_space<vmem>>, vector<8x128xf32>
    tpu.vector_store %arg5[%c0_7, %c0_8], %12 {strides = array<i32>} : memref<8x128xf32, #tpu.memory_space<vmem>>, vector<8x128xf32>,
    %c0_9 = arith.constant 0 : index
    %c0_10 = arith.constant 0 : index
    %14 = vector.load %arg6[%c0_9, %c0_10] : memref<8x128xf32, #tpu.memory_space<vmem>>, vector<8x128xf32>
    %15 = arith.addf %14, %10 : vector<8x128xf32>
    %c0_11 = arith.constant 0 : index
    %c0_12 = arith.constant 0 : index
    %16 = vector.load %arg6[%c0_11, %c0_12] : memref<8x128xf32, #tpu.memory_space<vmem>>, vector<8x128xf32>
    tpu.vector_store %arg6[%c0_11, %c0_12], %15 {strides = array<i32>} : memref<8x128xf32, #tpu.memory_space<vmem>>, vector<8x128xf32>,
    %c0_i32_13 = arith.constant 0 : i32
    %17 = arith.cmpi eq, %arg1, %c0_i32_13 : i32
    %18 = arith.extui %17 : i1 to i32
    %c0_i32_14 = arith.constant 0 : i32
    %19 = arith.cmpi ne, %18, %c0_i32_14 : i32
    scf.if %19 {
      %c0_15 = arith.constant 0 : index
      %c0_16 = arith.constant 0 : index
      %20 = vector.load %arg5[%c0_15, %c0_16] : memref<8x128xf32, #tpu.memory_space<vmem>>, vector<8x128xf32>
      %21 = vector.shape_cast %20 : vector<8x128xf32> to vector<1x8x128xf32>
      %cst_17 = arith.constant dense<0.000000e+00> : vector<1xf32>
      %22 = vector.multi_reduction <add>, %21, %cst_17 [1, 2] : vector<1x8x128xf32> to vector<1xf32>
      %23 = vector.shape_cast %22 : vector<1xf32> to vector<1x1x1xf32>
      %24 = vector.extract %23[0, 0, 0] : f32 from vector<1x1x1xf32>
      %c0_18 = arith.constant 0 : index
      %c0_19 = arith.constant 0 : index
      %25 = memref.load %arg4[%c0_18, %c0_19] : memref<1x2xf32, #tpu.memory_space<smem>>
      memref.store %24, %arg4[%c0_18, %c0_19] : memref<1x2xf32, #tpu.memory_space<smem>>
      %c0_20 = arith.constant 0 : index
      %c0_21 = arith.constant 0 : index
      %26 = vector.load %arg6[%c0_20, %c0_21] : memref<8x128xf32, #tpu.memory_space<vmem>>, vector<8x128xf32>
      %27 = vector.shape_cast %26 : vector<8x128xf32> to vector<1x8x128xf32>
      %cst_22 = arith.constant dense<0.000000e+00> : vector<1xf32>
      %28 = vector.multi_reduction <add>, %27, %cst_22 [1, 2] : vector<1x8x128xf32> to vector<1xf32>
      %29 = vector.shape_cast %28 : vector<1xf32> to vector<1x1x1xf32>
      %30 = vector.extract %29[0, 0, 0] : f32 from vector<1x1x1xf32>
      %c0_23 = arith.constant 0 : index
      %c1 = arith.constant 1 : index
      %31 = memref.load %arg4[%c0_23, %c1] : memref<1x2xf32, #tpu.memory_space<smem>>
      memref.store %30, %arg4[%c0_23, %c1] : memref<1x2xf32, #tpu.memory_space<smem>>
    } else {
    }
    return
  }
  func.func @transform_0(%arg0: i32, %arg1: i32) -> (i32, i32) {
    %c1_i32 = arith.constant 1 : i32
    %0 = arith.muli %arg0, %c1_i32 : i32
    %1 = arith.addi %0, %arg1 : i32
    %c0_i32 = arith.constant 0 : i32
    %2 = arith.minsi %1, %c0_i32 : i32
    %c0_i32_0 = arith.constant 0 : i32
    %c0_i32_1 = arith.constant 0 : i32
    return %2, %c0_i32_0 : i32, i32
  }
  func.func @transform_1(%arg0: i32, %arg1: i32) -> (i32, i32) {
    %c1_i32 = arith.constant 1 : i32
    %0 = arith.muli %arg0, %c1_i32 : i32
    %1 = arith.addi %0, %arg1 : i32
    %c0_i32 = arith.constant 0 : i32
    %2 = arith.minsi %1, %c0_i32 : i32
    %c0_i32_0 = arith.constant 0 : i32
    %c0_i32_1 = arith.constant 0 : i32
    return %2, %c0_i32_0 : i32, i32
  }
  func.func @transform_2(%arg0: i32, %arg1: i32) -> (i32, i32) {
    %c0_i32 = arith.constant 0 : i32
    %c0_i32_0 = arith.constant 0 : i32
    return %arg0, %c0_i32 : i32, i32
  }
}

</mosaic_0001>

<llo_original>
// kernel: tpu_custom_call.1
$region0: #{tpu_custom_call.1}
  #allocation0 [shape = 'u32[]', space=smem, size = 0x4, offset = 0x4, fixed_abs, tag = 'smem constant byte address 0x4 - core index']
  #allocation1 [shape = 'u32[144,128]{1,0:T(1,128)}', space=vmem, size = 0x12000, scoped, tag = 'internal scratch']
  #allocation2 [shape = 'f32[8,128]{1,0:T(8,128)}', space=vmem, size = 0x1000, scoped, tag = 'scratch operand']
  #allocation3 [shape = 'f32[8,128]{1,0:T(8,128)}', space=vmem, size = 0x1000, scoped, tag = 'scratch operand']
  %s0 = inlined_call_operand.hbm [shape: f32[16,128], index: 0, kind: input, shape index: {}]
  %s1 = inlined_call_operand.hbm [shape: f32[16,128], index: 1, kind: input, shape index: {}]
  %s2 = inlined_call_operand.hbm [shape: f32[1,2], index: 2, kind: output, shape index: {}]
  %s3 = sld [smem:[#allocation0]]
  $region34: #{tpu_custom_call.1} parent=0
    _
  %s5 = ssub.s32 1, %s3
  %s6 = scalar_select 0, %s5, %s3
  $region1: #{tpu_custom_call.1} parent=0
    #allocation4 [shape = 'u8[8192]{0}', space=vmem, size = 0x2000, scoped, tag = 'input window, operand 0, single buffered']
    #allocation5 [shape = 's32[1]{0}', space=sflag, size = 0x4, scoped, tag = 'scoped memory for tpu_custom_call.1']
    #allocation6 [shape = 's32[1]{0}', space=sflag, size = 0x4, scoped, tag = 'scoped memory for tpu_custom_call.1']
    #allocation7 [shape = 'u8[8192]{0}', space=vmem, size = 0x2000, scoped, tag = 'input window, operand 1, single buffered']
    #allocation8 [shape = 's32[1]{0}', space=sflag, size = 0x4, scoped, tag = 'scoped memory for tpu_custom_call.1']
    #allocation9 [shape = 'u8[512]{0}', space=smem, size = 0x200, scoped, tag = 'output window, operand 0, single buffered']
    %7 = vsyncpa [#allocation5], 0
    %8 = vsyncpa [#allocation8], 0
    %9 = vsyncpa [#allocation6], 0
    // Predicated region
    $region2: #{tpu_custom_call.1} parent=1 // pred_check
      _
    $region3: #{tpu_custom_call.1} parent=1 // pred_check_branch
      %11 = sbr.rel (0) target = $region5
    $region4: #{tpu_custom_call.1} parent=1 // pred_region
      %s12 = sadd.s32 0, 0
      %p13 = scmp.lt.s32.totalorder %s12, 0
      %s14 = scalar_select %p13, %s12, 0
      %s15 = smul.u32 2, %s14
      %s17 = ssub.s32 256, 256
      %18 = vsyncadd [#allocation5], %s17
      %s19 = smul.addr %s15, 128
      %s20 = scalar_lea.hbm %s0, %s19
      %s21 = sshll.u32 [#allocation4], 4
      %s22 = int_to_ptr.vmem [resolvable:$true] %s21
      %27 = dma.hbm_to_vmem [thread:$0]  %s20, 256, %s22, [#allocation5], 128, 128, 8
    $region5: #{tpu_custom_call.1} parent=1 // pred_fallthru
      _
    // Predicated region
    $region6: #{tpu_custom_call.1} parent=1 // pred_check
      _
    $region7: #{tpu_custom_call.1} parent=1 // pred_check_branch
      %29 = sbr.rel (0) target = $region9
    $region8: #{tpu_custom_call.1} parent=1 // pred_region
      %s30 = sadd.s32 0, 0
      %p31 = scmp.lt.s32.totalorder %s30, 0
      %s32 = scalar_select %p31, %s30, 0
      %s33 = smul.u32 2, %s32
      %s35 = ssub.s32 256, 256
      %36 = vsyncadd [#allocation8], %s35
      %s37 = smul.addr %s33, 128
      %s38 = scalar_lea.hbm %s1, %s37
      %s39 = sshll.u32 [#allocation7], 4
      %s40 = int_to_ptr.vmem [resolvable:$true] %s39
      %45 = dma.hbm_to_vmem [thread:$0]  %s38, 256, %s40, [#allocation8], 128, 128, 8
    $region9: #{tpu_custom_call.1} parent=1 // pred_fallthru
      _
    // Predicated region
    $region10: #{tpu_custom_call.1} parent=1 // pred_check
      _
    $region11: #{tpu_custom_call.1} parent=1 // pred_check_branch
      %47 = sbr.rel (0) target = $region13
    $region12: #{tpu_custom_call.1} parent=1 // pred_region
      %48 = dma.done [#allocation5], 256
    $region13: #{tpu_custom_call.1} parent=1 // pred_fallthru
      _
    // Predicated region
    $region14: #{tpu_custom_call.1} parent=1 // pred_check
      _
    $region15: #{tpu_custom_call.1} parent=1 // pred_check_branch
      %50 = sbr.rel (0) target = $region17
    $region16: #{tpu_custom_call.1} parent=1 // pred_region
      %51 = dma.done [#allocation8], 256
    $region17: #{tpu_custom_call.1} parent=1 // pred_fallthru
      _
    %s52 = sadd.s32 0, 0
    %p53 = scmp.lt.s32.totalorder %s52, 0
    %s54 = scalar_select %p53, %s52, 0
    %s55 = smul.u32 2, %s54
    %s56 = sadd.s32 0, 0
    %p57 = scmp.lt.s32.totalorder %s56, 0
    %s58 = scalar_select %p57, %s56, 0
    %s59 = smul.u32 2, %s58
    %p60 = scmp.eq.s32.totalorder 0, 0
    // Predicated region
    $region18: #{tpu_custom_call.1} parent=1 // pred_check
      %p61 = pneg %p60
    $region19: #{tpu_custom_call.1} parent=1 // pred_check_branch
      %63 = sbr.rel (%p61) target = $region21
    $region20: #{tpu_custom_call.1} parent=1 // pred_region
      %64 = vst [vmem:[#allocation2] sm:$0xff] 0.0
      %65 = vst [vmem:[#allocation3] sm:$0xff] 0.0
    $region21: #{tpu_custom_call.1} parent=1 // pred_fallthru
      _
    %v66 = vld [vmem:[#allocation4] sm:$0xff]
    %v67 = vld [vmem:[#allocation4 + $0x8] sm:$0xff]
    %v68 = vld [vmem:[#allocation7] sm:$0xff]
    %v69 = vld [vmem:[#allocation7 + $0x8] sm:$0xff]
    %v70 = vmul.f32 %v66, %v68
    %v71 = vmul.f32 %v67, %v69
    %v72 = vadd.f32 %v66, %v68
    %v73 = vadd.f32 %v67, %v69
    %v74 = vadd.f32 %v70, %v71
    %v75 = vadd.f32 %v72, %v73
    %v76 = vld [vmem:[#allocation2] sm:$0xff]
    %v77 = vadd.f32 %v76, %v74
    %78 = vst [vmem:[#allocation2] sm:$0xff] %v77
    %v79 = vld [vmem:[#allocation3] sm:$0xff]
    %v80 = vadd.f32 %v79, %v75
    %81 = vst [vmem:[#allocation3] sm:$0xff] %v80
    // Predicated region
    $region22: #{tpu_custom_call.1} parent=1 // pred_check
      %p82 = pneg %p60
    $region23: #{tpu_custom_call.1} parent=1 // pred_check_branch
      %84 = sbr.rel (%p82) target = $region25
    $region24: #{tpu_custom_call.1} parent=1 // pred_region
      %v85 = vld [vmem:[#allocation2] sm:$0xff]
      %86 = vadd.xlane.f32.xlu0 %v85
      %v87 = vpop.xlane.xlu0 %86
      %v88 = vrot.slane %v87, 4
      %v89 = vadd.f32 %v87, %v88
      %v90 = vrot.slane %v89, 2
      %v91 = vadd.f32 %v89, %v90
      %v92 = vrot.slane %v91, 1
      %v93 = vadd.f32 %v91, %v92
      %s94 = vtos %v93
      %s95 = scalar_lea.smem [#allocation9], 0
      %96 = sst [smem:[%s95]] %s94
      %v97 = vld [vmem:[#allocation3] sm:$0xff]
      %98 = vadd.xlane.f32.xlu0 %v97
      %v99 = vpop.xlane.xlu0 %98
      %v100 = vrot.slane %v99, 4
      %v101 = vadd.f32 %v99, %v100
      %v102 = vrot.slane %v101, 2
      %v103 = vadd.f32 %v101, %v102
      %v104 = vrot.slane %v103, 1
      %v105 = vadd.f32 %v103, %v104
      %s106 = vtos %v105
      %s107 = scalar_lea.smem [#allocation9], 1
      %108 = sst [smem:[%s107]] %s106
    $region25: #{tpu_custom_call.1} parent=1 // pred_fallthru
      _
    // Predicated region
    $region26: #{tpu_custom_call.1} parent=1 // pred_check
      _
    $region27: #{tpu_custom_call.1} parent=1 // pred_check_branch
      %110 = sbr.rel (0) target = $region29
    $region28: #{tpu_custom_call.1} parent=1 // pred_region
      %s112 = ssub.s32 16, 16
      %113 = vsyncadd [#allocation6], %s112
      %116 = dma.smem_to_hbm [#allocation9], 16, %s2, [#allocation6]
    $region29: #{tpu_custom_call.1} parent=1 // pred_fallthru
      _
    // Predicated region
    $region30: #{tpu_custom_call.1} parent=1 // pred_check
      _
    $region31: #{tpu_custom_call.1} parent=1 // pred_check_branch
      %118 = sbr.rel (0) target = $region33
    $region32: #{tpu_custom_call.1} parent=1 // pred_region
      %119 = dma.done [#allocation6], 16
    $region33: #{tpu_custom_call.1} parent=1 // pred_fallthru
      _
    %120 = sfence
    %121 = vsyncpa [#allocation5], 1
    %122 = vsyncpa [#allocation8], 1
    %123 = vsyncpa [#allocation6], 1

</llo_original>
